<compile_context>
chip_gen: v6e
topology: v6e:2x2x1
jax: 0.10.0
libtpu: 0.0.40
codegen_flags: <defaults>
</compile_context>

<pallas_src>
import functools

import jax
import jax.numpy as jnp
from jax import lax
from jax.experimental import pallas as pl
from jax.experimental.pallas import tpu as pltpu


def _spatial_gather_kernel(probs_ref, feats_ref, out_ref,
                           m_sc, l_sc, acc_sc, *, scale):
    """One (batch, hw-tile) grid step.

    probs_ref: (1, K, t_hw)  logits tile
    feats_ref: (1, C, t_hw)  features tile (native dtype, not transposed in HBM)
    out_ref:   (1, K, C)     output block, resident across the hw grid axis
    m_sc/l_sc: (K, 1) f32    online-softmax running max / running denominator
    acc_sc:    (K, C) f32    running unnormalized context accumulator
    """
    h = pl.program_id(1)

    @pl.when(h == 0)
    def _init():
        m_sc[...] = jnp.full_like(m_sc, -jnp.inf)
        l_sc[...] = jnp.zeros_like(l_sc)
        acc_sc[...] = jnp.zeros_like(acc_sc)

    p = probs_ref[0].astype(jnp.float32)            # (K, t_hw)
    if scale != 1.0:                                # statically skipped when scale == 1
        p = p * scale
    f = feats_ref[0]                                # (C, t_hw), native dtype

    m_prev = m_sc[...]
    m_new = jnp.maximum(m_prev, jnp.max(p, axis=-1, keepdims=True))   # (K, 1)
    alpha = jnp.exp(m_prev - m_new)                                   # (K, 1)
    e = jnp.exp(p - m_new)                                            # (K, t_hw)

    l_sc[...] = alpha * l_sc[...] + jnp.sum(e, axis=-1, keepdims=True)

    # (K, t_hw) x (C, t_hw), contracting the hw dim of both -> (K, C).
    # Keeps feats in its native dtype; accumulate in f32 on the MXU.
    part = lax.dot_general(
        e.astype(f.dtype), f,
        dimension_numbers=(((1,), (1,)), ((), ())),
        preferred_element_type=jnp.float32)
    acc_sc[...] = alpha * acc_sc[...] + part
    m_sc[...] = m_new

    @pl.when(h == pl.num_programs(1) - 1)
    def _finalize():
        # Normalize after the matmul: K*C multiplies instead of K*HW divides.
        inv_l = pl.reciprocal(l_sc[...])
        out_ref[0] = (acc_sc[...] * inv_l).astype(out_ref.dtype)


def spatial_gather_module(feats, probs, scale=1.0, *, t_hw_max=2048):
    """JAX/Pallas equivalent of SpatialGatherModule.forward.

    feats: (B, C, H, W)   probs: (B, K, H, W)
    returns: (B, C, K, 1)
    """
    B, C, H, W = feats.shape
    Bp, K, Hp, Wp = probs.shape
    assert B == Bp and (H, W) == (Hp, Wp)
    assert t_hw_max % 128 == 0
    HW = H * W

    probs_flat = probs.reshape(B, K, HW)     # (B, K, HW)
    feats_flat = feats.reshape(B, C, HW)     # (B, C, HW)  -- no HBM transpose

    # Tile the spatial (HW) reduction axis; pad ragged tails so that padded
    # positions contribute exp(~-inf) = 0 to the softmax and 0 to the matmul.
    if HW <= t_hw_max:
        t_hw = HW
        hw_pad = HW
    else:
        t_hw = t_hw_max
        hw_pad = ((HW + t_hw - 1) // t_hw) * t_hw
    if hw_pad != HW:
        pad = hw_pad - HW
        probs_flat = jnp.pad(probs_flat, ((0, 0), (0, 0), (0, pad)),
                             constant_values=-1e30)
        feats_flat = jnp.pad(feats_flat, ((0, 0), (0, 0), (0, pad)))
    num_hw = hw_pad // t_hw

    kernel = functools.partial(_spatial_gather_kernel, scale=float(scale))

    # VMEM budget: double-buffered input tiles + double-buffered output + scratch.
    isz = lambda dt: jnp.dtype(dt).itemsize
    need = (2 * t_hw * (K * isz(probs_flat.dtype) + C * isz(feats_flat.dtype))
            + 2 * K * C * isz(feats.dtype)
            + 4 * (K * C + 2 * K * 128)
            + (4 << 20))
    vmem_limit = int(min(max(need, 16 << 20), 64 << 20))

    ocr_context = pl.pallas_call(
        kernel,
        out_shape=jax.ShapeDtypeStruct((B, K, C), feats.dtype),
        grid_spec=pltpu.PrefetchScalarGridSpec(
            num_scalar_prefetch=0,
            grid=(B, num_hw),
            in_specs=[
                pl.BlockSpec((1, K, t_hw), lambda b, h: (b, 0, h)),
                pl.BlockSpec((1, C, t_hw), lambda b, h: (b, 0, h)),
            ],
            out_specs=pl.BlockSpec((1, K, C), lambda b, h: (b, 0, 0)),
            scratch_shapes=[
                pltpu.VMEM((K, 1), jnp.float32),   # running max
                pltpu.VMEM((K, 1), jnp.float32),   # running denom
                pltpu.VMEM((K, C), jnp.float32),   # context accumulator
            ],
        ),
        compiler_params=pltpu.CompilerParams(
            dimension_semantics=("parallel", "arbitrary"),
            vmem_limit_bytes=vmem_limit,
        ),
    )(probs_flat, feats_flat)

    # (B, K, C) -> (B, C, K) -> (B, C, K, 1) ; touches only B*K*C elements.
    return ocr_context.transpose(0, 2, 1)[..., None]


def _reference(feats, probs, scale=1.0):
    B, C, H, W = feats.shape
    _, K, _, _ = probs.shape
    p = probs.reshape(B, K, -1)
    f = feats.reshape(B, C, -1).transpose(0, 2, 1)
    p = jax.nn.softmax(scale * p, axis=2)
    ctx = jnp.einsum("bks,bsc->bkc", p, f)
    return ctx.transpose(0, 2, 1)[..., None]


if __name__ == "__main__":
    key = jax.random.PRNGKey(0)
    k1, k2, k3, k4 = jax.random.split(key, 4)

    # Case 1: single HW tile, scale == 1 (scale multiply statically elided).
    B, C, K, H, W = 2, 32, 8, 16, 16
    feats = jax.random.normal(k1, (B, C, H, W), dtype=jnp.float32)
    probs = jax.random.normal(k2, (B, K, H, W), dtype=jnp.float32)
    out = jax.block_until_ready(spatial_gather_module(feats, probs, scale=1.0))
    ref = _reference(feats, probs, scale=1.0)
    assert out.shape == (B, C, K, 1), out.shape
    assert jnp.allclose(out, ref, atol=1e-4, rtol=1e-4)

    # Case 2: multi-tile online softmax with ragged HW (padding) and scale != 1.
    B, C, K, H, W = 2, 32, 8, 18, 18
    feats = jax.random.normal(k3, (B, C, H, W), dtype=jnp.float32)
    probs = jax.random.normal(k4, (B, K, H, W), dtype=jnp.float32)
    out = jax.block_until_ready(
        spatial_gather_module(feats, probs, scale=2.0, t_hw_max=128))
    ref = _reference(feats, probs, scale=2.0)
    assert out.shape == (B, C, K, 1), out.shape
    assert jnp.allclose(out, ref, atol=1e-4, rtol=1e-4)

    print("KERNEL_OK")
</pallas_src>

<mosaic_0001>
module attributes {stable_mosaic.version = 11 : i64} {
  func.func @_spatial_gather_kernel(%arg0: i32, %arg1: i32, %arg2: memref<1x8x256xf32, #tpu.memory_space<vmem>>, %arg3: memref<1x32x256xf32, #tpu.memory_space<vmem>>, %arg4: memref<1x8x32xf32, #tpu.memory_space<vmem>>, %arg5: memref<8x1xf32, #tpu.memory_space<vmem>>, %arg6: memref<8x1xf32, #tpu.memory_space<vmem>>, %arg7: memref<8x32xf32, #tpu.memory_space<vmem>>) attributes {dimension_semantics = [#tpu.dimension_semantics<parallel>, #tpu.dimension_semantics<arbitrary>], iteration_bounds = array<i64: 2, 1>, scalar_prefetch = 0 : i64, scratch_operands = 3 : i64, tpu.core_type = #tpu.core_type<tc>, window_params = [{transform_indices = @transform_0, window_bounds = array<i64: 1, 8, 256>}, {transform_indices = @transform_1, window_bounds = array<i64: 1, 32, 256>}, {transform_indices = @transform_2, window_bounds = array<i64: 1, 8, 32>}]} {
    %c0_i32 = arith.constant 0 : i32
    %0 = arith.cmpi eq, %arg1, %c0_i32 : i32
    %1 = arith.extui %0 : i1 to i32
    %c0_i32_0 = arith.constant 0 : i32
    %2 = arith.cmpi ne, %1, %c0_i32_0 : i32
    scf.if %2 {
      %cst_22 = arith.constant 0xFF800000 : f32
      %32 = vector.broadcast %cst_22 : f32 to vector<8x1xf32>
      %c0_23 = arith.constant 0 : index
      %c0_24 = arith.constant 0 : index
      %33 = vector.load %arg5[%c0_23, %c0_24] : memref<8x1xf32, #tpu.memory_space<vmem>>, vector<8x1xf32>
      tpu.vector_store %arg5[%c0_23, %c0_24], %32 {strides = array<i32>} : memref<8x1xf32, #tpu.memory_space<vmem>>, vector<8x1xf32>,
      %cst_25 = arith.constant 0.000000e+00 : f32
      %34 = vector.broadcast %cst_25 : f32 to vector<8x1xf32>
      %c0_26 = arith.constant 0 : index
      %c0_27 = arith.constant 0 : index
      %35 = vector.load %arg6[%c0_26, %c0_27] : memref<8x1xf32, #tpu.memory_space<vmem>>, vector<8x1xf32>
      tpu.vector_store %arg6[%c0_26, %c0_27], %34 {strides = array<i32>} : memref<8x1xf32, #tpu.memory_space<vmem>>, vector<8x1xf32>,
      %cst_28 = arith.constant 0.000000e+00 : f32
      %36 = vector.broadcast %cst_28 : f32 to vector<8x32xf32>
      %c0_29 = arith.constant 0 : index
      %c0_30 = arith.constant 0 : index
      %37 = vector.load %arg7[%c0_29, %c0_30] : memref<8x32xf32, #tpu.memory_space<vmem>>, vector<8x32xf32>
      tpu.vector_store %arg7[%c0_29, %c0_30], %36 {strides = array<i32>} : memref<8x32xf32, #tpu.memory_space<vmem>>, vector<8x32xf32>,
    } else {
    }
    %c0 = arith.constant 0 : index
    %c0_1 = arith.constant 0 : index
    %c0_2 = arith.constant 0 : index
    %3 = vector.load %arg2[%c0, %c0_1, %c0_2] : memref<1x8x256xf32, #tpu.memory_space<vmem>>, vector<1x8x256xf32>
    %4 = vector.shape_cast %3 : vector<1x8x256xf32> to vector<8x256xf32>
    %c0_3 = arith.constant 0 : index
    %c0_4 = arith.constant 0 : index
    %c0_5 = arith.constant 0 : index
    %5 = vector.load %arg3[%c0_3, %c0_4, %c0_5] : memref<1x32x256xf32, #tpu.memory_space<vmem>>, vector<1x32x256xf32>
    %6 = vector.shape_cast %5 : vector<1x32x256xf32> to vector<32x256xf32>
    %c0_6 = arith.constant 0 : index
    %c0_7 = arith.constant 0 : index
    %7 = vector.load %arg5[%c0_6, %c0_7] : memref<8x1xf32, #tpu.memory_space<vmem>>, vector<8x1xf32>
    %cst = arith.constant dense<0xFF800000> : vector<8xf32>
    %8 = vector.multi_reduction <maximumf>, %4, %cst [1] : vector<8x256xf32> to vector<8xf32>
    %9 = vector.shape_cast %8 : vector<8xf32> to vector<8x1xf32>
    %10 = arith.maximumf %7, %9 : vector<8x1xf32>
    %11 = arith.subf %7, %10 : vector<8x1xf32>
    %12 = math.exp %11 : vector<8x1xf32>
    %13 = vector.broadcast %10 : vector<8x1xf32> to vector<8x256xf32>
    %14 = arith.subf %4, %13 : vector<8x256xf32>
    %15 = math.exp %14 : vector<8x256xf32>
    %c0_8 = arith.constant 0 : index
    %c0_9 = arith.constant 0 : index
    %16 = vector.load %arg6[%c0_8, %c0_9] : memref<8x1xf32, #tpu.memory_space<vmem>>, vector<8x1xf32>
    %17 = arith.mulf %12, %16 : vector<8x1xf32>
    %cst_10 = arith.constant dense<0.000000e+00> : vector<8xf32>
    %18 = vector.multi_reduction <add>, %15, %cst_10 [1] : vector<8x256xf32> to vector<8xf32>
    %19 = vector.shape_cast %18 : vector<8xf32> to vector<8x1xf32>
    %20 = arith.addf %17, %19 : vector<8x1xf32>
    %c0_11 = arith.constant 0 : index
    %c0_12 = arith.constant 0 : index
    %21 = vector.load %arg6[%c0_11, %c0_12] : memref<8x1xf32, #tpu.memory_space<vmem>>, vector<8x1xf32>
    tpu.vector_store %arg6[%c0_11, %c0_12], %20 {strides = array<i32>} : memref<8x1xf32, #tpu.memory_space<vmem>>, vector<8x1xf32>,
    %cst_13 = arith.constant dense<0.000000e+00> : vector<8x32xf32>
    %22 = tpu.matmul %15, %6, %cst_13 {dimension_numbers = #tpu.dot_dimension_numbers<[1], [1], [0], [0], [0, 0, 1, 0], [], []>} : vector<8x256xf32>, vector<32x256xf32>, vector<8x32xf32> -> vector<8x32xf32>
    %c0_14 = arith.constant 0 : index
    %c0_15 = arith.constant 0 : index
    %23 = vector.load %arg7[%c0_14, %c0_15] : memref<8x32xf32, #tpu.memory_space<vmem>>, vector<8x32xf32>
    %24 = vector.broadcast %12 : vector<8x1xf32> to vector<8x32xf32>
    %25 = arith.mulf %24, %23 : vector<8x32xf32>
    %26 = arith.addf %25, %22 : vector<8x32xf32>
    %c0_16 = arith.constant 0 : index
    %c0_17 = arith.constant 0 : index
    %27 = vector.load %arg7[%c0_16, %c0_17] : memref<8x32xf32, #tpu.memory_space<vmem>>, vector<8x32xf32>
    tpu.vector_store %arg7[%c0_16, %c0_17], %26 {strides = array<i32>} : memref<8x32xf32, #tpu.memory_space<vmem>>, vector<8x32xf32>,
    %c0_18 = arith.constant 0 : index
    %c0_19 = arith.constant 0 : index
    %28 = vector.load %arg5[%c0_18, %c0_19] : memref<8x1xf32, #tpu.memory_space<vmem>>, vector<8x1xf32>
    tpu.vector_store %arg5[%c0_18, %c0_19], %10 {strides = array<i32>} : memref<8x1xf32, #tpu.memory_space<vmem>>, vector<8x1xf32>,
    %c0_i32_20 = arith.constant 0 : i32
    %29 = arith.cmpi eq, %arg1, %c0_i32_20 : i32
    %30 = arith.extui %29 : i1 to i32
    %c0_i32_21 = arith.constant 0 : i32
    %31 = arith.cmpi ne, %30, %c0_i32_21 : i32
    scf.if %31 {
      %c0_22 = arith.constant 0 : index
      %c0_23 = arith.constant 0 : index
      %32 = vector.load %arg6[%c0_22, %c0_23] : memref<8x1xf32, #tpu.memory_space<vmem>>, vector<8x1xf32>
      %33 = tpu.reciprocal %32 : vector<8x1xf32> -> vector<8x1xf32>
      %c0_24 = arith.constant 0 : index
      %c0_25 = arith.constant 0 : index
      %34 = vector.load %arg7[%c0_24, %c0_25] : memref<8x32xf32, #tpu.memory_space<vmem>>, vector<8x32xf32>
      %35 = vector.broadcast %33 : vector<8x1xf32> to vector<8x32xf32>
      %36 = arith.mulf %34, %35 : vector<8x32xf32>
      %c0_26 = arith.constant 0 : index
      %c0_27 = arith.constant 0 : index
      %c0_28 = arith.constant 0 : index
      %37 = vector.load %arg4[%c0_26, %c0_27, %c0_28] : memref<1x8x32xf32, #tpu.memory_space<vmem>>, vector<1x8x32xf32>
      %38 = vector.shape_cast %37 : vector<1x8x32xf32> to vector<8x32xf32>
      %39 = vector.shape_cast %36 : vector<8x32xf32> to vector<1x8x32xf32>
      tpu.vector_store %arg4[%c0_26, %c0_27, %c0_28], %39 {strides = array<i32>} : memref<1x8x32xf32, #tpu.memory_space<vmem>>, vector<1x8x32xf32>,
    } else {
    }
    return
  }
  func.func @transform_0(%arg0: i32, %arg1: i32) -> (i32, i32, i32) {
    %c0_i32 = arith.constant 0 : i32
    %c0_i32_0 = arith.constant 0 : i32
    return %arg0, %c0_i32, %arg1 : i32, i32, i32
  }
  func.func @transform_1(%arg0: i32, %arg1: i32) -> (i32, i32, i32) {
    %c0_i32 = arith.constant 0 : i32
    %c0_i32_0 = arith.constant 0 : i32
    return %arg0, %c0_i32, %arg1 : i32, i32, i32
  }
  func.func @transform_2(%arg0: i32, %arg1: i32) -> (i32, i32, i32) {
    %c0_i32 = arith.constant 0 : i32
    %c0_i32_0 = arith.constant 0 : i32
    %c0_i32_1 = arith.constant 0 : i32
    return %arg0, %c0_i32, %c0_i32_0 : i32, i32, i32
  }
}

</mosaic_0001>

<llo_original>
// kernel: tpu_custom_call.1
$region0: #{tpu_custom_call.1}
  #allocation0 [shape = 'u32[]', space=smem, size = 0x4, offset = 0x4, fixed_abs, tag = 'smem constant byte address 0x4 - core index']
  #allocation1 [shape = 'u32[144,128]{1,0:T(1,128)}', space=vmem, size = 0x12000, scoped, tag = 'internal scratch']
  #allocation2 [shape = 'f32[8,1]{1,0:T(8,128)}', space=vmem, size = 0x1000, scoped, tag = 'scratch operand']
  #allocation3 [shape = 'f32[8,1]{1,0:T(8,128)}', space=vmem, size = 0x1000, scoped, tag = 'scratch operand']
  #allocation4 [shape = 'f32[8,32]{1,0:T(8,128)}', space=vmem, size = 0x1000, scoped, tag = 'scratch operand']
  %s0 = inlined_call_operand.hbm [shape: f32[2,8,256], index: 0, kind: input, shape index: {}]
  %s1 = inlined_call_operand.hbm [shape: f32[2,32,256], index: 1, kind: input, shape index: {}]
  %s2 = inlined_call_operand.hbm [shape: f32[2,8,32], index: 2, kind: output, shape index: {}]
  %s3 = sld [smem:[#allocation0]]
  $region57: #{tpu_custom_call.1} parent=0
    _
  %s5 = ssub.s32 1, %s3
  %s6 = scalar_select 0, %s5, %s3
  $region1: #{tpu_custom_call.1} parent=0
    #allocation5 [shape = 'u8[16384]{0}', space=vmem, size = 0x4000, scoped, tag = 'input window, operand 0']
    #allocation6 [shape = 's32[2]{0}', space=sflag, size = 0x8, scoped, tag = 'scoped memory for tpu_custom_call.1']
    #allocation7 [shape = 's32[2]{0}', space=sflag, size = 0x8, scoped, tag = 'scoped memory for tpu_custom_call.1']
    #allocation8 [shape = 'u8[65536]{0}', space=vmem, size = 0x10000, scoped, tag = 'input window, operand 1']
    #allocation9 [shape = 's32[2]{0}', space=sflag, size = 0x8, scoped, tag = 'scoped memory for tpu_custom_call.1']
    #allocation10 [shape = 'u8[8192]{0}', space=vmem, size = 0x2000, scoped, tag = 'output window, operand 0']
    %7 = vsyncpa [#allocation6], 0
    %s8 = scalar_lea.sflag [#allocation6], 1
    %9 = vsyncpa %s8, 0
    %10 = vsyncpa [#allocation9], 0
    %s11 = scalar_lea.sflag [#allocation9], 1
    %12 = vsyncpa %s11, 0
    %13 = vsyncpa [#allocation7], 0
    %s14 = scalar_lea.sflag [#allocation7], 1
    %15 = vsyncpa %s14, 0
    loop: start=0, step=1, limit=4
    $region2: #{tpu_custom_call.1} parent=1 // loop_pre_header
      _
    $region3: #{tpu_custom_call.1} parent=1 // loop_header
      %s17 = sphi 0, %s21
      %p18 = scmp.ge.s32.totalorder %s17, 4
      %s24 = sphi 0, %s36
      %s25 = sphi 0, %s32
      %s26 = sphi 0, %s24
      %s27 = sphi 0, %s25
      %s28 = sphi 0, %s26
      %s29 = sphi 0, %s27
      %s41 = sphi 0, %s43
      %s44 = sphi 0, %s41
      %s45 = sphi 0, %s44
      %s61 = sphi 0, %s45
      %s69 = sphi 0, %s71
      %s72 = sphi 0, %s69
      %s73 = sphi 0, %s72
      %s89 = sphi 0, %s73
      %s95 = sphi 0, %s97
      %s98 = sphi 0, %s95
      %s99 = sphi 0, %s98
      %s115 = sphi 0, %s99
    $region4: #{tpu_custom_call.1} parent=1 // loop_header_branch
      %20 = sbr.rel (%p18) target = $region8
    $region5: #{tpu_custom_call.1} parent=1 // loop_body
      %s22 = ssub.s32 %s17, 1
      %s23 = ssub.s32 %s17, 2
      %s30 = sadd.s32 1, %s25
      %p31 = scmp.ge.s32.totalorder %s30, 1
      %s32 = scalar_select %p31, 0, %s30
      %s33 = sadd.s32 1, %s24
      %s34 = scalar_select %p31, %s33, %s24
      %p35 = scmp.ge.s32.totalorder %s34, 2
      %s36 = scalar_select %p35, 0, %s34
      %s37 = ssub.s32 %s24, %s36
      %s38 = ssub.s32 %s25, %s32
      %s39 = sor.u32 %s37, %s38
      %p40 = scmp.eq.s32.totalorder %s39, 0
      %s42 = sadd.s32 %s41, 1
      %s43 = scalar_select %p40, %s41, %s42
      %p46 = pneg %p40
      %p47 = scmp.eq.s32.totalorder %s17, 1
      %p48 = por %p46, %p47
      %p49 = scmp.ne.s32.totalorder %s41, %s44
      %p50 = scmp.eq.s32.totalorder %s17, 0
      %p51 = por %p49, %p50
      %p52 = scmp.ne.s32.totalorder %s41, %s44
      %p53 = scmp.eq.s32.totalorder %s22, 1
      %p54 = por %p52, %p53
      %p55 = scmp.ne.s32.totalorder %s44, %s45
      %p56 = scmp.eq.s32.totalorder %s22, 0
      %p57 = por %p55, %p56
      %p58 = scmp.ne.s32.totalorder %s44, %s45
      %p59 = scmp.eq.s32.totalorder %s23, 1
      %p60 = por %p58, %p59
      %p62 = scmp.ne.s32.totalorder %s45, %s61
      %p63 = scmp.eq.s32.totalorder %s23, 0
      %p64 = por %p62, %p63
      %s65 = ssub.s32 %s24, %s36
      %s66 = ssub.s32 %s25, %s32
      %s67 = sor.u32 %s65, %s66
      %p68 = scmp.eq.s32.totalorder %s67, 0
      %s70 = sadd.s32 %s69, 1
      %s71 = scalar_select %p68, %s69, %s70
      %p74 = pneg %p68
      %p75 = scmp.eq.s32.totalorder %s17, 1
      %p76 = por %p74, %p75
      %p77 = scmp.ne.s32.totalorder %s69, %s72
      %p78 = scmp.eq.s32.totalorder %s17, 0
      %p79 = por %p77, %p78
      %p80 = scmp.ne.s32.totalorder %s69, %s72
      %p81 = scmp.eq.s32.totalorder %s22, 1
      %p82 = por %p80, %p81
      %p83 = scmp.ne.s32.totalorder %s72, %s73
      %p84 = scmp.eq.s32.totalorder %s22, 0
      %p85 = por %p83, %p84
      %p86 = scmp.ne.s32.totalorder %s72, %s73
      %p87 = scmp.eq.s32.totalorder %s23, 1
      %p88 = por %p86, %p87
      %p90 = scmp.ne.s32.totalorder %s73, %s89
      %p91 = scmp.eq.s32.totalorder %s23, 0
      %p92 = por %p90, %p91
      %s93 = ssub.s32 %s24, %s36
      %p94 = scmp.eq.s32.totalorder %s93, 0
      %s96 = sadd.s32 %s95, 1
      %s97 = scalar_select %p94, %s95, %s96
      %p100 = pneg %p94
      %p101 = scmp.eq.s32.totalorder %s17, 1
      %p102 = por %p100, %p101
      %p103 = scmp.ne.s32.totalorder %s95, %s98
      %p104 = scmp.eq.s32.totalorder %s17, 0
      %p105 = por %p103, %p104
      %p106 = scmp.ne.s32.totalorder %s95, %s98
      %p107 = scmp.eq.s32.totalorder %s22, 1
      %p108 = por %p106, %p107
      %p109 = scmp.ne.s32.totalorder %s98, %s99
      %p110 = scmp.eq.s32.totalorder %s22, 0
      %p111 = por %p109, %p110
      %p112 = scmp.ne.s32.totalorder %s98, %s99
      %p113 = scmp.eq.s32.totalorder %s23, 1
      %p114 = por %p112, %p113
      %p116 = scmp.ne.s32.totalorder %s99, %s115
      %p117 = scmp.eq.s32.totalorder %s23, 0
      %p118 = por %p116, %p117
      %p119 = scmp.le.s32.totalorder 1, %s17
      %p120 = scmp.lt.s32.totalorder %s17, 3
      %p121 = pnand %p119, %p120
      %p122 = pneg %p121
      // Predicated region
      $region9: #{tpu_custom_call.1} parent=5 // pred_check
        _
      $region10: #{tpu_custom_call.1} parent=5 // pred_check_branch
        %124 = sbr.rel (%p121) target = $region12
      $region11: #{tpu_custom_call.1} parent=5 // pred_region
        %s125 = ssub.s32 %s17, 1
      $region12: #{tpu_custom_call.1} parent=5 // pred_fallthru
        _
      %p126 = scmp.lt.s32.totalorder %s17, 2
      // Predicated region
      $region13: #{tpu_custom_call.1} parent=5 // pred_check
        %p127 = pneg %p126
      $region14: #{tpu_custom_call.1} parent=5 // pred_check_branch
        %129 = sbr.rel (%p127) target = $region16
      $region15: #{tpu_custom_call.1} parent=5 // pred_region
        // Predicated region
        $region17: #{tpu_custom_call.1} parent=15 // pred_check
          %p130 = pneg %p51
        $region18: #{tpu_custom_call.1} parent=15 // pred_check_branch
          %132 = sbr.rel (%p130) target = $region20
        $region19: #{tpu_custom_call.1} parent=15 // pred_region
          %s133 = sand.u32 %s41, 1
          %s134 = scalar_lea.sflag [#allocation6], %s133
          %s135 = sand.u32 %s41, 1
          %s136 = smul.addr %s135, 16
          %s137 = scalar_lea.vmem [#allocation5], %s136
          %s138 = smul.u32 2, %s25
          %s140 = ssub.s32 256, 256
          %141 = vsyncadd %s134, %s140
          %s142 = smul.addr %s24, 2
          %s143 = sadd.s32 %s138, %s142
          %s144 = smul.addr %s143, 128
          %s145 = scalar_lea.hbm %s0, %s144
          %s147 = sshll.u32 %s137, 4
          %s148 = int_to_ptr.vmem [resolvable:$true] %s147
          %150 = dma.hbm_to_vmem [thread:$0]  %s145, 256, %s148, %s134
        $region20: #{tpu_custom_call.1} parent=15 // pred_fallthru
          _
        // Predicated region
        $region21: #{tpu_custom_call.1} parent=15 // pred_check
          %p151 = pneg %p79
        $region22: #{tpu_custom_call.1} parent=15 // pred_check_branch
          %153 = sbr.rel (%p151) target = $region24
        $region23: #{tpu_custom_call.1} parent=15 // pred_region
          %s154 = sand.u32 %s69, 1
          %s155 = scalar_lea.sflag [#allocation9], %s154
          %s156 = sand.u32 %s69, 1
          %s157 = smul.addr %s156, 64
          %s158 = scalar_lea.vmem [#allocation8], %s157
          %s159 = smul.u32 2, %s25
          %s161 = ssub.s32 1024, 1024
          %162 = vsyncadd %s155, %s161
          %s163 = smul.addr %s24, 8
          %s164 = sadd.s32 %s159, %s163
          %s165 = smul.addr %s164, 128
          %s166 = scalar_lea.hbm %s1, %s165
          %s167 = sshll.u32 %s158, 4
          %s168 = int_to_ptr.vmem [resolvable:$true] %s167
          %173 = dma.hbm_to_vmem [thread:$0]  %s166, 1024, %s168, %s155, 256, 256, 16
        $region24: #{tpu_custom_call.1} parent=15 // pred_fallthru
          _
      $region16: #{tpu_custom_call.1} parent=5 // pred_fallthru
        _
      %p174 = scmp.le.s32.totalorder 1, %s17
      %p175 = scmp.lt.s32.totalorder %s17, 3
      %p176 = pnand %p174, %p175
      %p177 = pneg %p176
      // Predicated region
      $region25: #{tpu_custom_call.1} parent=5 // pred_check
        _
      $region26: #{tpu_custom_call.1} parent=5 // pred_check_branch
        %179 = sbr.rel (%p176) target = $region28
      $region27: #{tpu_custom_call.1} parent=5 // pred_region
        %s180 = ssub.s32 %s17, 1
        %s181 = sand.u32 %s44, 1
        %s182 = scalar_lea.sflag [#allocation6], %s181
        %s183 = sand.u32 %s44, 1
        %s184 = smul.addr %s183, 16
        %s185 = scalar_lea.vmem [#allocation5], %s184
        // Predicated region
        $region29: #{tpu_custom_call.1} parent=27 // pred_check
          %p186 = pneg %p57
        $region30: #{tpu_custom_call.1} parent=27 // pred_check_branch
          %188 = sbr.rel (%p186) target = $region32
        $region31: #{tpu_custom_call.1} parent=27 // pred_region
          %189 = dma.done %s182, 256
        $region32: #{tpu_custom_call.1} parent=27 // pred_fallthru
          _
        %s190 = sand.u32 %s72, 1
        %s191 = scalar_lea.sflag [#allocation9], %s190
        %s192 = sand.u32 %s72, 1
        %s193 = smul.addr %s192, 64
        %s194 = scalar_lea.vmem [#allocation8], %s193
        // Predicated region
        $region33: #{tpu_custom_call.1} parent=27 // pred_check
          %p195 = pneg %p85
        $region34: #{tpu_custom_call.1} parent=27 // pred_check_branch
          %197 = sbr.rel (%p195) target = $region36
        $region35: #{tpu_custom_call.1} parent=27 // pred_region
          %198 = dma.done %s191, 1024
        $region36: #{tpu_custom_call.1} parent=27 // pred_fallthru
          _
        %s199 = sand.u32 %s44, 1
        %s200 = scalar_lea.sflag [#allocation6], %s199
        %s201 = sand.u32 %s44, 1
        %s202 = smul.addr %s201, 16
        %s203 = scalar_lea.vmem [#allocation5], %s202
        %p204 = pneg %p57
        %p205 = pneg %p54
        %s206 = sand.u32 %s72, 1
        %s207 = scalar_lea.sflag [#allocation9], %s206
        %s208 = sand.u32 %s72, 1
        %s209 = smul.addr %s208, 64
        %s210 = scalar_lea.vmem [#allocation8], %s209
        %p211 = pneg %p85
        %p212 = pneg %p82
        %p213 = pneg %p111
        %p214 = pneg %p108
        %s215 = sand.u32 %s98, 1
        %s216 = scalar_lea.sflag [#allocation7], %s215
        %s217 = sand.u32 %s98, 1
        %s218 = smul.addr %s217, 8
        %s219 = scalar_lea.vmem [#allocation10], %s218
        %s220 = smul.u32 2, %s27
        %s221 = smul.u32 2, %s27
        %p222 = scmp.eq.s32.totalorder %s27, 0
        // Predicated region
        $region37: #{tpu_custom_call.1} parent=27 // pred_check
          %p223 = pneg %p222
        $region38: #{tpu_custom_call.1} parent=27 // pred_check_branch
          %225 = sbr.rel (%p223) target = $region40
        $region39: #{tpu_custom_call.1} parent=27 // pred_region
          %vm226 = vcmask 7168
          %227 = vst.msk [vmem:[#allocation2] sm:$0xff] %vm226, -inf
          %228 = vst.msk [vmem:[#allocation3] sm:$0xff] %vm226, 0.0
          %vm229 = vcmask 261120
          %230 = vst.msk [vmem:[#allocation4] sm:$0xff] %vm229, 0.0
        $region40: #{tpu_custom_call.1} parent=27 // pred_fallthru
          _
        %v231 = vld [vmem:[%s185] sm:$0xff]
        %v232 = vld [vmem:[%s185 + $0x8] sm:$0xff]
        %v233 = vld [vmem:[%s194] sm:$0xff]
        %v234 = vld [vmem:[%s194 + $0x8] sm:$0xff]
        %v235 = vld [vmem:[%s194 + $0x10] sm:$0xff]
        %v236 = vld [vmem:[%s194 + $0x18] sm:$0xff]
        %v237 = vld [vmem:[%s194 + $0x20] sm:$0xff]
        %v238 = vld [vmem:[%s194 + $0x28] sm:$0xff]
        %v239 = vld [vmem:[%s194 + $0x30] sm:$0xff]
        %v240 = vld [vmem:[%s194 + $0x38] sm:$0xff]
        %v241 = vld [vmem:[#allocation2] sm:$0xff]
        %v242 = vmax.f32 %v231, %v232
        %243 = vmax.xlane.f32.xlu0 %v242
        %v244 = vpop.xlane.xlu0 %243
        %v245 = vmax.f32 %v241, %v244
        %v246 = vsub.f32 %v241, %v245
        %v247 = vmul.f32 %v246, 1.442695
        %v248 = vpow.pop %v247
        %250 = vset.pattern.permute.xlu0 0
        %251 = vperm.xlu0 %250, %v245
        %v252 = vpop.permute.xlu0 %251
        %v254 = vsub.f32 %v231, %v252
        %v255 = vsub.f32 %v232, %v252
        %v256 = vmul.f32 %v254, 1.442695
        %v257 = vpow.pop %v256
        %v258 = vmul.f32 %v255, 1.442695
        %v259 = vpow.pop %v258
        %v260 = vld [vmem:[#allocation3] sm:$0xff]
        %v261 = vmul.f32 %v248, %v260
        %v262 = vadd.f32 %v257, %v259
        %263 = vadd.xlane.f32.xlu0 %v262
        %v264 = vpop.xlane.xlu0 %263
        %v265 = vadd.f32 %v261, %v264
        %vm266 = vcmask 7168
        %267 = vst.msk [vmem:[#allocation3] sm:$0xff] %vm266, %v265
        %268 = vmatprep.subr.mxu0 0.0
        %269 = vmatpush1.xpose.msra.mxu0 0.0
        %270 = vmatprep.subr.mxu0 0.0
        %271 = vmatpush1.xpose.msra.mxu0 0.0
        %272 = vmatprep.subr.mxu0 0.0
        %273 = vmatpush1.xpose.msra.mxu0 0.0
        %274 = vmatprep.subr.mxu0 0.0
        %275 = vmatpush1.xpose.msra.mxu0 0.0
        %276 = vmatprep.subr.mxu0 0.0
        %277 = vmatpush1.xpose.msra.mxu0 0.0
        %278 = vmatprep.subr.mxu0 0.0
        %279 = vmatpush1.xpose.msra.mxu0 0.0
        %280 = vmatprep.subr.mxu0 0.0
        %281 = vmatpush1.xpose.msra.mxu0 0.0
        %282 = vmatprep.subr.mxu0 0.0
        %283 = vmatpush1.xpose.msra.mxu0 0.0
        %284 = vmatprep.subr.mxu0 0.0
        %285 = vmatpush1.xpose.msra.mxu0 0.0
        %286 = vmatprep.subr.mxu0 0.0
        %287 = vmatpush1.xpose.msra.mxu0 0.0
        %288 = vmatprep.subr.mxu0 0.0
        %289 = vmatpush1.xpose.msra.mxu0 0.0
        %290 = vmatprep.subr.mxu0 0.0
        %291 = vmatpush1.xpose.msra.mxu0 0.0
        %292 = vmatprep.subr.mxu0 %v240
        %293 = vmatpush1.xpose.msra.mxu0 %v239
        %294 = vmatprep.subr.mxu0 %v238
        %295 = vmatpush1.xpose.msra.mxu0 %v237
        %296 = vmatprep.subr.mxu0 %v236
        %297 = vmatpush1.xpose.msra.mxu0 %v235
        %298 = vmatprep.subr.mxu0 %v234
        %299 = vmatpush1.xpose.msra.mxu0 %v233
        %300 = vmatprep.subr.mxu0 0.0
        %301 = vmatpush2.xpose.msra.mxu0 0.0
        %302 = vmatprep.subr.mxu0 0.0
        %303 = vmatpush2.xpose.msra.mxu0 0.0
        %304 = vmatprep.subr.mxu0 0.0
        %305 = vmatpush2.xpose.msra.mxu0 0.0
        %306 = vmatprep.subr.mxu0 0.0
        %307 = vmatpush2.xpose.msra.mxu0 0.0
        %308 = vmatprep.subr.mxu0 0.0
        %309 = vmatpush2.xpose.msra.mxu0 0.0
        %310 = vmatprep.subr.mxu0 0.0
        %311 = vmatpush2.xpose.msra.mxu0 0.0
        %312 = vmatprep.subr.mxu0 0.0
        %313 = vmatpush2.xpose.msra.mxu0 0.0
        %314 = vmatprep.subr.mxu0 0.0
        %315 = vmatpush2.xpose.msra.mxu0 0.0
        %316 = vmatprep.subr.mxu0 0.0
        %317 = vmatpush2.xpose.msra.mxu0 0.0
        %318 = vmatprep.subr.mxu0 0.0
        %319 = vmatpush2.xpose.msra.mxu0 0.0
        %320 = vmatprep.subr.mxu0 0.0
        %321 = vmatpush2.xpose.msra.mxu0 0.0
        %322 = vmatprep.subr.mxu0 0.0
        %323 = vmatpush2.xpose.msra.mxu0 0.0
        %324 = vmatprep.subr.mxu0 0.0
        %325 = vmatpush2.xpose.msra.mxu0 0.0
        %326 = vmatprep.subr.mxu0 0.0
        %327 = vmatpush2.xpose.msra.mxu0 0.0
        %328 = vmatprep.subr.mxu0 0.0
        %329 = vmatpush2.xpose.msra.mxu0 0.0
        %330 = vmatprep.subr.mxu0 0.0
        %331 = vmatpush2.xpose.msra.mxu0 0.0
        %332 = vmatprep.mubr.f32.mxu0 %v259
        %333 = vmatmul.mubr.f32.gmra.mxu0 %v257
        %v334 = vpop.f32.mrf.mxu0
        %v335 = vadd.f32 0.0, %v334
        %v336 = vpop.f32.mrf.mxu0
        %337 = vdwg.mxu0
        %v338 = vld [vmem:[#allocation4] sm:$0xff]
        %340 = vset.pattern.permute.xlu0 0
        %341 = vperm.xlu0 %340, %v248
        %v342 = vpop.permute.xlu0 %341
        %v344 = vmul.f32 %v342, %v338
        %v345 = vadd.f32 %v344, %v335
        %vm346 = vcmask 261120
        %347 = vst.msk [vmem:[#allocation4] sm:$0xff] %vm346, %v345
        %348 = vst.msk [vmem:[#allocation2] sm:$0xff] %vm266, %v245
        // Predicated region
        $region41: #{tpu_custom_call.1} parent=27 // pred_check
          %p349 = pneg %p222
        $region42: #{tpu_custom_call.1} parent=27 // pred_check_branch
          %351 = sbr.rel (%p349) target = $region44
        $region43: #{tpu_custom_call.1} parent=27 // pred_region
          %v352 = vld [vmem:[#allocation3] sm:$0xff]
          %v353 = vrcp.pop %v352
          %v354 = vld [vmem:[#allocation4] sm:$0xff]
          %356 = vset.pattern.permute.xlu0 0
          %357 = vperm.xlu0 %356, %v353
          %v358 = vpop.permute.xlu0 %357
          %v360 = vmul.f32 %v354, %v358
          %361 = vst.msk [vmem:[%s219] sm:$0xff] %vm346, %v360
        $region44: #{tpu_custom_call.1} parent=27 // pred_fallthru
          _
        %s362 = sand.u32 %s98, 1
        %s363 = scalar_lea.sflag [#allocation7], %s362
        %s364 = sand.u32 %s98, 1
        %s365 = smul.addr %s364, 8
        %s366 = scalar_lea.vmem [#allocation10], %s365
        // Predicated region
        $region45: #{tpu_custom_call.1} parent=27 // pred_check
          %p367 = pneg %p108
        $region46: #{tpu_custom_call.1} parent=27 // pred_check_branch
          %369 = sbr.rel (%p367) target = $region48
        $region47: #{tpu_custom_call.1} parent=27 // pred_region
          %s371 = ssub.s32 128, 128
          %372 = vsyncadd %s363, %s371
          %s373 = smul.addr %s26, 128
          %s374 = scalar_lea.hbm %s2, %s373
          %s376 = sshll.u32 %s366, 4
          %s377 = int_to_ptr.vmem [resolvable:$true] %s376
          %379 = dma.vmem_to_hbm [thread:$0]  %s377, 128, %s374, %s363
        $region48: #{tpu_custom_call.1} parent=27 // pred_fallthru
          _
      $region28: #{tpu_custom_call.1} parent=5 // pred_fallthru
        _
      %p380 = scmp.le.s32.totalorder 2, %s17
      // Predicated region
      $region49: #{tpu_custom_call.1} parent=5 // pred_check
        %p381 = pneg %p380
      $region50: #{tpu_custom_call.1} parent=5 // pred_check_branch
        %383 = sbr.rel (%p381) target = $region52
      $region51: #{tpu_custom_call.1} parent=5 // pred_region
        %s384 = ssub.s32 %s17, 2
        // Predicated region
        $region53: #{tpu_custom_call.1} parent=51 // pred_check
          %p385 = pneg %p114
        $region54: #{tpu_custom_call.1} parent=51 // pred_check_branch
          %387 = sbr.rel (%p385) target = $region56
        $region55: #{tpu_custom_call.1} parent=51 // pred_region
          %s388 = sand.u32 %s99, 1
          %s389 = scalar_lea.sflag [#allocation7], %s388
          %s390 = sand.u32 %s99, 1
          %s391 = smul.addr %s390, 8
          %s392 = scalar_lea.vmem [#allocation10], %s391
          %393 = dma.done %s389, 128
        $region56: #{tpu_custom_call.1} parent=51 // pred_fallthru
          _
      $region52: #{tpu_custom_call.1} parent=5 // pred_fallthru
        _
    $region6: #{tpu_custom_call.1} parent=1 // loop_footer
      %s21 = sadd.s32 1, %s17
    $region7: #{tpu_custom_call.1} parent=1 // loop_footer_branch
      %16 = sbr.rel target = $region3
    $region8: #{tpu_custom_call.1} parent=1 // loop_exit
      _
    %394 = vsyncpa [#allocation6], 1
    %s395 = scalar_lea.sflag [#allocation6], 1
    %396 = vsyncpa %s395, 1
    %397 = vsyncpa [#allocation9], 1
    %s398 = scalar_lea.sflag [#allocation9], 1
    %399 = vsyncpa %s398, 1
    %400 = vsyncpa [#allocation7], 1
    %s401 = scalar_lea.sflag [#allocation7], 1
    %402 = vsyncpa %s401, 1

</llo_original>
